<compile_context>
chip_gen: v7x
topology: tpu7x:2x2x1
jax: 0.10.0
libtpu: 0.0.40
codegen_flags: <defaults>
</compile_context>

<pallas_src>
import functools

import jax
import jax.numpy as jnp
import numpy as np
from jax.experimental import pallas as pl
from jax.experimental.pallas import tpu as pltpu


def _round_up(x, m):
    return ((x + m - 1) // m) * m


def _triplet_kernel(a_ref, p_ref, n_ref, out_ref, acc_ref, *,
                    margin, batch, tb, steps, needs_mask):
    s = pl.program_id(0)   # parallel split (one per TensorCore on v7x)
    j = pl.program_id(1)   # batch-tile step within this split

    @pl.when(j == 0)
    def _():
        acc_ref[...] = jnp.zeros_like(acc_ref)

    # Upcast is a no-op for f32 inputs; for bf16 it happens in-register (VPU),
    # so HBM traffic stays at bf16 width.
    a = a_ref[...].astype(jnp.float32)
    p = p_ref[...].astype(jnp.float32)
    n = n_ref[...].astype(jnp.float32)

    # Fused: dp - dn = sum((a-p)^2 - (a-n)^2) = sum((p - n) * (p + n - 2a))
    # -> a single cross-lane (XLU) reduce per tile instead of two.
    prod = (p - n) * (p + n - 2.0 * a)                           # (tb, D)  VPU
    diff = jnp.sum(prod, axis=1, keepdims=True)                  # (tb, 1)  XLU
    hinge = jnp.maximum(diff + jnp.float32(margin), 0.0)         # (tb, 1)  VPU

    if needs_mask:
        # Rows beyond the true batch size (ragged tail tile and/or clamped
        # over-iterations from the 2-way core split) contribute zero.
        base = (s * steps + j) * tb
        row = jax.lax.broadcasted_iota(jnp.int32, (tb, 1), 0)
        hinge = jnp.where(base + row < batch, hinge, 0.0)

    # Per-sample accumulation in VMEM; reduce-to-scalar happens once per split.
    acc_ref[...] = acc_ref[...] + hinge

    @pl.when(j == pl.num_programs(1) - 1)
    def _():
        # Write this split's partial sum, broadcast into a lane-aligned tile.
        out_ref[...] = jnp.sum(acc_ref[...]) + jnp.zeros((1, 8, 128), jnp.float32)


def triplet_loss(anchor, positive, negative, margin, *, tb=None):
    B, D = anchor.shape
    itemsize = jnp.dtype(anchor.dtype).itemsize

    if tb is None:
        # VMEM budget for the three double-buffered (tb, D) input tiles.
        # 30 MiB keeps comfortable headroom even on v7x (64 MiB physical VMEM).
        budget = 30 * 1024 * 1024
        cap = budget // (6 * D * itemsize)        # 3 inputs x 2 pipeline buffers
        tb = max(8, min(2048, (cap // 8) * 8))
    tb = max(8, (tb // 8) * 8)                    # sublane-aligned
    tb = min(tb, _round_up(B, 8))                 # don't exceed the (padded) batch

    nb = pl.cdiv(B, tb)                           # number of batch tiles
    n_splits = 2 if nb >= 2 else 1                # use both v7x TensorCores
    steps = pl.cdiv(nb, n_splits)

    exact_grid = (n_splits * steps == nb)
    needs_mask = (not exact_grid) or (B % tb != 0)

    if exact_grid:
        def in_map(s, j):
            return (s * steps + j, 0)
    else:
        # Padded iterations: clamp to the last valid tile; the kernel masks them.
        def in_map(s, j):
            return (jnp.minimum(s * steps + j, nb - 1), 0)

    kernel = functools.partial(
        _triplet_kernel, margin=float(margin), batch=B, tb=tb, steps=steps,
        needs_mask=needs_mask,
    )

    # Advisory only: tells XLA this custom call is bandwidth-dominated.
    cost = pl.CostEstimate(
        flops=6 * B * D + 2 * B,
        transcendentals=0,
        bytes_accessed=3 * B * D * itemsize + n_splits * 8 * 128 * 4,
    )

    out = pl.pallas_call(
        kernel,
        out_shape=jax.ShapeDtypeStruct((n_splits, 8, 128), jnp.float32),
        grid_spec=pltpu.PrefetchScalarGridSpec(
            num_scalar_prefetch=0,
            grid=(n_splits, steps),
            in_specs=[
                pl.BlockSpec((tb, D), in_map),
                pl.BlockSpec((tb, D), in_map),
                pl.BlockSpec((tb, D), in_map),
            ],
            out_specs=pl.BlockSpec((1, 8, 128), lambda s, j: (s, 0, 0)),
            scratch_shapes=[pltpu.VMEM((tb, 1), jnp.float32)],
        ),
        compiler_params=pltpu.CompilerParams(
            dimension_semantics=("parallel", "arbitrary"),
            vmem_limit_bytes=48 * 1024 * 1024,
        ),
        cost_estimate=cost,
    )(anchor, positive, negative)

    # Combine per-split partial sums and take the mean.
    return jnp.sum(out[:, 0, 0]) / jnp.float32(B)


def triplet_loss_ref(anchor, positive, negative, margin):
    a = anchor.astype(jnp.float32)
    p = positive.astype(jnp.float32)
    n = negative.astype(jnp.float32)
    dp = jnp.sum((a - p) ** 2, axis=1)
    dn = jnp.sum((a - n) ** 2, axis=1)
    return jnp.mean(jnp.maximum(dp - dn + margin, 0.0))


if __name__ == "__main__":
    # TripletLoss.__init__ only takes `margin` — no learnable weights.
    margin = 1.0
    key = jax.random.PRNGKey(0)

    def make_inputs(k, B, D, dtype):
        ka, kp, kn = jax.random.split(k, 3)
        a = jax.random.normal(ka, (B, D), dtype=jnp.float32).astype(dtype)
        p = jax.random.normal(kp, (B, D), dtype=jnp.float32).astype(dtype)
        n = jax.random.normal(kn, (B, D), dtype=jnp.float32).astype(dtype)
        return a, p, n

    k1, k2, k3, k4 = jax.random.split(key, 4)

    # 1) Small aligned case, auto tile size (single tile, no masking).
    a, p, n = make_inputs(k1, 16, 128, jnp.float32)
    out = jax.block_until_ready(triplet_loss(a, p, n, margin))
    ref = triplet_loss_ref(a, p, n, margin)
    np.testing.assert_allclose(np.asarray(out), np.asarray(ref), rtol=1e-5, atol=1e-5)

    # 2) Ragged batch + forced small tile: exercises multi-step grid, the 2-way
    #    parallel split, clamped index_map and masked tail rows.
    a, p, n = make_inputs(k2, 37, 128, jnp.float32)
    out = jax.block_until_ready(triplet_loss(a, p, n, margin, tb=8))
    ref = triplet_loss_ref(a, p, n, margin)
    np.testing.assert_allclose(np.asarray(out), np.asarray(ref), rtol=1e-5, atol=1e-5)

    # 3) Exactly-divisible multi-tile batch: exercises the mask-free fast path
    #    across both splits.
    a, p, n = make_inputs(k3, 64, 128, jnp.float32)
    out = jax.block_until_ready(triplet_loss(a, p, n, margin, tb=16))
    ref = triplet_loss_ref(a, p, n, margin)
    np.testing.assert_allclose(np.asarray(out), np.asarray(ref), rtol=1e-5, atol=1e-5)

    # 4) bf16 inputs (half the HBM traffic); kernel upcasts in-register.
    a, p, n = make_inputs(k4, 24, 128, jnp.bfloat16)
    out = jax.block_until_ready(triplet_loss(a, p, n, margin))
    ref = triplet_loss_ref(a, p, n, margin)
    np.testing.assert_allclose(np.asarray(out), np.asarray(ref), rtol=1e-4, atol=1e-4)

    print("KERNEL_OK")
</pallas_src>

<mosaic_0001>
module attributes {stable_mosaic.version = 11 : i64} {
  func.func @_triplet_kernel(%arg0: i32, %arg1: i32, %arg2: memref<16x128xf32, #tpu.memory_space<vmem>>, %arg3: memref<16x128xf32, #tpu.memory_space<vmem>>, %arg4: memref<16x128xf32, #tpu.memory_space<vmem>>, %arg5: memref<1x8x128xf32, #tpu.memory_space<vmem>>, %arg6: memref<16x1xf32, #tpu.memory_space<vmem>>) attributes {dimension_semantics = [#tpu.dimension_semantics<parallel>, #tpu.dimension_semantics<arbitrary>], iteration_bounds = array<i64: 1, 1>, scalar_prefetch = 0 : i64, scratch_operands = 1 : i64, tpu.core_type = #tpu.core_type<tc>, window_params = [{transform_indices = @transform_0, window_bounds = array<i64: 16, 128>}, {transform_indices = @transform_1, window_bounds = array<i64: 16, 128>}, {transform_indices = @transform_2, window_bounds = array<i64: 16, 128>}, {transform_indices = @transform_3, window_bounds = array<i64: 1, 8, 128>}]} {
    %c0_i32 = arith.constant 0 : i32
    %0 = arith.cmpi eq, %arg1, %c0_i32 : i32
    %1 = arith.extui %0 : i1 to i32
    %c0_i32_0 = arith.constant 0 : i32
    %2 = arith.cmpi ne, %1, %c0_i32_0 : i32
    scf.if %2 {
      %cst_15 = arith.constant 0.000000e+00 : f32
      %24 = vector.broadcast %cst_15 : f32 to vector<16x1xf32>
      %c0_16 = arith.constant 0 : index
      %c0_17 = arith.constant 0 : index
      %25 = vector.load %arg6[%c0_16, %c0_17] : memref<16x1xf32, #tpu.memory_space<vmem>>, vector<16x1xf32>
      tpu.vector_store %arg6[%c0_16, %c0_17], %24 {strides = array<i32>} : memref<16x1xf32, #tpu.memory_space<vmem>>, vector<16x1xf32>,
    } else {
    }
    %c0 = arith.constant 0 : index
    %c0_1 = arith.constant 0 : index
    %3 = vector.load %arg2[%c0, %c0_1] : memref<16x128xf32, #tpu.memory_space<vmem>>, vector<16x128xf32>
    %c0_2 = arith.constant 0 : index
    %c0_3 = arith.constant 0 : index
    %4 = vector.load %arg3[%c0_2, %c0_3] : memref<16x128xf32, #tpu.memory_space<vmem>>, vector<16x128xf32>
    %c0_4 = arith.constant 0 : index
    %c0_5 = arith.constant 0 : index
    %5 = vector.load %arg4[%c0_4, %c0_5] : memref<16x128xf32, #tpu.memory_space<vmem>>, vector<16x128xf32>
    %6 = arith.subf %4, %5 : vector<16x128xf32>
    %7 = arith.addf %4, %5 : vector<16x128xf32>
    %cst = arith.constant 2.000000e+00 : f32
    %8 = vector.broadcast %cst : f32 to vector<16x128xf32>
    %9 = arith.mulf %8, %3 : vector<16x128xf32>
    %10 = arith.subf %7, %9 : vector<16x128xf32>
    %11 = arith.mulf %6, %10 : vector<16x128xf32>
    %cst_6 = arith.constant dense<0.000000e+00> : vector<16xf32>
    %12 = vector.multi_reduction <add>, %11, %cst_6 [1] : vector<16x128xf32> to vector<16xf32>
    %13 = vector.shape_cast %12 : vector<16xf32> to vector<16x1xf32>
    %cst_7 = arith.constant 1.000000e+00 : f32
    %14 = vector.broadcast %cst_7 : f32 to vector<16x1xf32>
    %15 = arith.addf %13, %14 : vector<16x1xf32>
    %cst_8 = arith.constant 0.000000e+00 : f32
    %16 = vector.broadcast %cst_8 : f32 to vector<16x1xf32>
    %17 = arith.maximumf %15, %16 : vector<16x1xf32>
    %c0_9 = arith.constant 0 : index
    %c0_10 = arith.constant 0 : index
    %18 = vector.load %arg6[%c0_9, %c0_10] : memref<16x1xf32, #tpu.memory_space<vmem>>, vector<16x1xf32>
    %19 = arith.addf %18, %17 : vector<16x1xf32>
    %c0_11 = arith.constant 0 : index
    %c0_12 = arith.constant 0 : index
    %20 = vector.load %arg6[%c0_11, %c0_12] : memref<16x1xf32, #tpu.memory_space<vmem>>, vector<16x1xf32>
    tpu.vector_store %arg6[%c0_11, %c0_12], %19 {strides = array<i32>} : memref<16x1xf32, #tpu.memory_space<vmem>>, vector<16x1xf32>,
    %c0_i32_13 = arith.constant 0 : i32
    %21 = arith.cmpi eq, %arg1, %c0_i32_13 : i32
    %22 = arith.extui %21 : i1 to i32
    %c0_i32_14 = arith.constant 0 : i32
    %23 = arith.cmpi ne, %22, %c0_i32_14 : i32
    scf.if %23 {
      %c0_15 = arith.constant 0 : index
      %c0_16 = arith.constant 0 : index
      %24 = vector.load %arg6[%c0_15, %c0_16] : memref<16x1xf32, #tpu.memory_space<vmem>>, vector<16x1xf32>
      %25 = vector.shape_cast %24 : vector<16x1xf32> to vector<1x16x1xf32>
      %cst_17 = arith.constant dense<0.000000e+00> : vector<1xf32>
      %26 = vector.multi_reduction <add>, %25, %cst_17 [1, 2] : vector<1x16x1xf32> to vector<1xf32>
      %27 = vector.shape_cast %26 : vector<1xf32> to vector<1x1x1xf32>
      %28 = vector.extract %27[0, 0, 0] : f32 from vector<1x1x1xf32>
      %cst_18 = arith.constant 0.000000e+00 : f32
      %29 = vector.broadcast %cst_18 : f32 to vector<1x8x128xf32>
      %30 = vector.broadcast %28 : f32 to vector<1x8x128xf32>
      %31 = arith.addf %30, %29 : vector<1x8x128xf32>
      %c0_19 = arith.constant 0 : index
      %c0_20 = arith.constant 0 : index
      %c0_21 = arith.constant 0 : index
      %32 = vector.load %arg5[%c0_19, %c0_20, %c0_21] : memref<1x8x128xf32, #tpu.memory_space<vmem>>, vector<1x8x128xf32>
      tpu.vector_store %arg5[%c0_19, %c0_20, %c0_21], %31 {strides = array<i32>} : memref<1x8x128xf32, #tpu.memory_space<vmem>>, vector<1x8x128xf32>,
    } else {
    }
    return
  }
  func.func @transform_0(%arg0: i32, %arg1: i32) -> (i32, i32) {
    %c1_i32 = arith.constant 1 : i32
    %0 = arith.muli %arg0, %c1_i32 : i32
    %1 = arith.addi %0, %arg1 : i32
    %c0_i32 = arith.constant 0 : i32
    %c0_i32_0 = arith.constant 0 : i32
    return %1, %c0_i32 : i32, i32
  }
  func.func @transform_1(%arg0: i32, %arg1: i32) -> (i32, i32) {
    %c1_i32 = arith.constant 1 : i32
    %0 = arith.muli %arg0, %c1_i32 : i32
    %1 = arith.addi %0, %arg1 : i32
    %c0_i32 = arith.constant 0 : i32
    %c0_i32_0 = arith.constant 0 : i32
    return %1, %c0_i32 : i32, i32
  }
  func.func @transform_2(%arg0: i32, %arg1: i32) -> (i32, i32) {
    %c1_i32 = arith.constant 1 : i32
    %0 = arith.muli %arg0, %c1_i32 : i32
    %1 = arith.addi %0, %arg1 : i32
    %c0_i32 = arith.constant 0 : i32
    %c0_i32_0 = arith.constant 0 : i32
    return %1, %c0_i32 : i32, i32
  }
  func.func @transform_3(%arg0: i32, %arg1: i32) -> (i32, i32, i32) {
    %c0_i32 = arith.constant 0 : i32
    %c0_i32_0 = arith.constant 0 : i32
    %c0_i32_1 = arith.constant 0 : i32
    return %arg0, %c0_i32, %c0_i32_0 : i32, i32, i32
  }
}

</mosaic_0001>

<llo_original>
// kernel: tpu_custom_call.1
$region0: #{tpu_custom_call.1}
  #allocation0 [shape = 'u32[]', space=smem, size = 0x4, offset = 0x4, fixed_abs, tag = 'smem constant byte address 0x4 - core index']
  #allocation1 [shape = 'u32[144,128]{1,0:T(1,128)}', space=vmem, size = 0x12000, scoped, tag = 'internal scratch']
  #allocation2 [shape = 'f32[16,1]{1,0:T(8,128)}', space=vmem, size = 0x2000, scoped, tag = 'scratch operand']
  %s0 = inlined_call_operand.hbm [shape: f32[16,128], index: 0, kind: input, shape index: {}]
  %s1 = inlined_call_operand.hbm [shape: f32[16,128], index: 1, kind: input, shape index: {}]
  %s2 = inlined_call_operand.hbm [shape: f32[16,128], index: 2, kind: input, shape index: {}]
  %s3 = inlined_call_operand.hbm [shape: f32[1,8,128], index: 3, kind: output, shape index: {}]
  %s4 = sld [smem:[#allocation0]]
  $region42: #{tpu_custom_call.1} parent=0
    _
  %s6 = ssub.s32 1, %s4
  %s7 = scalar_select 0, %s6, %s4
  $region1: #{tpu_custom_call.1} parent=0
    #allocation3 [shape = 'u8[8192]{0}', space=vmem, size = 0x2000, scoped, tag = 'input window, operand 0, single buffered']
    #allocation4 [shape = 's32[1]{0}', space=sflag, size = 0x4, scoped, tag = 'scoped memory for tpu_custom_call.1']
    #allocation5 [shape = 's32[1]{0}', space=sflag, size = 0x4, scoped, tag = 'scoped memory for tpu_custom_call.1']
    #allocation6 [shape = 'u8[8192]{0}', space=vmem, size = 0x2000, scoped, tag = 'input window, operand 1, single buffered']
    #allocation7 [shape = 's32[1]{0}', space=sflag, size = 0x4, scoped, tag = 'scoped memory for tpu_custom_call.1']
    #allocation8 [shape = 'u8[8192]{0}', space=vmem, size = 0x2000, scoped, tag = 'input window, operand 2, single buffered']
    #allocation9 [shape = 'u8[4096]{0}', space=vmem, size = 0x1000, scoped, tag = 'output window, operand 0, single buffered']
    %8 = vsyncpa [#allocation4], 0
    %9 = vsyncpa [#allocation7], 0
    %10 = vsyncpa [#allocation5], 0
    // Predicated region
    $region2: #{tpu_custom_call.1} parent=1 // pred_check
      _
    $region3: #{tpu_custom_call.1} parent=1 // pred_check_branch
      %12 = sbr.rel (0) target = $region5
    $region4: #{tpu_custom_call.1} parent=1 // pred_region
      %s13 = sadd.s32 0, 0
      %s14 = smul.u32 2, %s13
      %s16 = ssub.s32 256, 256
      %17 = vsyncadd [#allocation4], %s16
      %s18 = smul.addr %s14, 128
      %s19 = scalar_lea.hbm %s0, %s18
      %s20 = sshll.u32 [#allocation3], 4
      %s21 = int_to_ptr.vmem [resolvable:$true] %s20
      %26 = dma.hbm_to_vmem [thread:$0]  %s19, 256, %s21, [#allocation4], 128, 128, 8
    $region5: #{tpu_custom_call.1} parent=1 // pred_fallthru
      _
    // Predicated region
    $region6: #{tpu_custom_call.1} parent=1 // pred_check
      _
    $region7: #{tpu_custom_call.1} parent=1 // pred_check_branch
      %28 = sbr.rel (0) target = $region9
    $region8: #{tpu_custom_call.1} parent=1 // pred_region
      %s29 = sadd.s32 0, 0
      %s30 = smul.u32 2, %s29
      %s32 = ssub.s32 256, 256
      %33 = vsyncadd [#allocation7], %s32
      %s34 = smul.addr %s30, 128
      %s35 = scalar_lea.hbm %s1, %s34
      %s36 = sshll.u32 [#allocation6], 4
      %s37 = int_to_ptr.vmem [resolvable:$true] %s36
      %42 = dma.hbm_to_vmem [thread:$0]  %s35, 256, %s37, [#allocation7], 128, 128, 8
    $region9: #{tpu_custom_call.1} parent=1 // pred_fallthru
      _
    // Predicated region
    $region10: #{tpu_custom_call.1} parent=1 // pred_check
      _
    $region11: #{tpu_custom_call.1} parent=1 // pred_check_branch
      %44 = sbr.rel (0) target = $region13
    $region12: #{tpu_custom_call.1} parent=1 // pred_region
      %s45 = sadd.s32 0, 0
      %s46 = smul.u32 2, %s45
      %s48 = ssub.s32 256, 256
      %49 = vsyncadd [#allocation7], %s48
      %s50 = smul.addr %s46, 128
      %s51 = scalar_lea.hbm %s2, %s50
      %s52 = sshll.u32 [#allocation8], 4
      %s53 = int_to_ptr.vmem [resolvable:$true] %s52
      %58 = dma.hbm_to_vmem [thread:$0]  %s51, 256, %s53, [#allocation7], 128, 128, 8
    $region13: #{tpu_custom_call.1} parent=1 // pred_fallthru
      _
    // Predicated region
    $region14: #{tpu_custom_call.1} parent=1 // pred_check
      _
    $region15: #{tpu_custom_call.1} parent=1 // pred_check_branch
      %60 = sbr.rel (0) target = $region17
    $region16: #{tpu_custom_call.1} parent=1 // pred_region
      %61 = dma.done [#allocation4], 256
    $region17: #{tpu_custom_call.1} parent=1 // pred_fallthru
      _
    // Predicated region
    $region18: #{tpu_custom_call.1} parent=1 // pred_check
      _
    $region19: #{tpu_custom_call.1} parent=1 // pred_check_branch
      %63 = sbr.rel (0) target = $region21
    $region20: #{tpu_custom_call.1} parent=1 // pred_region
      %64 = dma.done [#allocation7], 256
    $region21: #{tpu_custom_call.1} parent=1 // pred_fallthru
      _
    // Predicated region
    $region22: #{tpu_custom_call.1} parent=1 // pred_check
      _
    $region23: #{tpu_custom_call.1} parent=1 // pred_check_branch
      %66 = sbr.rel (0) target = $region25
    $region24: #{tpu_custom_call.1} parent=1 // pred_region
      %67 = dma.done [#allocation7], 256
    $region25: #{tpu_custom_call.1} parent=1 // pred_fallthru
      _
    %s68 = sadd.s32 0, 0
    %s69 = smul.u32 2, %s68
    %s70 = sadd.s32 0, 0
    %s71 = smul.u32 2, %s70
    %s72 = sadd.s32 0, 0
    %s73 = smul.u32 2, %s72
    %p74 = scmp.eq.s32.totalorder 0, 0
    // Predicated region
    $region26: #{tpu_custom_call.1} parent=1 // pred_check
      %p75 = pneg %p74
    $region27: #{tpu_custom_call.1} parent=1 // pred_check_branch
      %77 = sbr.rel (%p75) target = $region29
    $region28: #{tpu_custom_call.1} parent=1 // pred_region
      %vm78 = vcmask 7168
      %79 = vst.msk [vmem:[#allocation2] sm:$0xff] %vm78, 0.0
      %80 = vst.msk [vmem:[#allocation2 + $0x8] sm:$0xff] %vm78, 0.0
    $region29: #{tpu_custom_call.1} parent=1 // pred_fallthru
      _
    %v81 = vld [vmem:[#allocation3] sm:$0xff]
    %v82 = vld [vmem:[#allocation3 + $0x8] sm:$0xff]
    %v83 = vld [vmem:[#allocation6] sm:$0xff]
    %v84 = vld [vmem:[#allocation6 + $0x8] sm:$0xff]
    %v85 = vld [vmem:[#allocation8] sm:$0xff]
    %v86 = vld [vmem:[#allocation8 + $0x8] sm:$0xff]
    %v87 = vsub.f32 %v83, %v85
    %v88 = vsub.f32 %v84, %v86
    %v89 = vadd.f32 %v83, %v85
    %v90 = vadd.f32 %v84, %v86
    %v91 = vmul.f32 %v81, 2.0
    %v92 = vmul.f32 %v82, 2.0
    %v93 = vsub.f32 %v89, %v91
    %v94 = vsub.f32 %v90, %v92
    %v95 = vmul.f32 %v87, %v93
    %v96 = vmul.f32 %v88, %v94
    %97 = vadd.xlane.f32.xlu0 %v95
    %v98 = vpop.xlane.xlu0 %97
    %99 = vadd.xlane.f32.xlu0 %v96
    %v100 = vpop.xlane.xlu0 %99
    %v101 = vadd.f32 %v98, 1.0
    %v102 = vadd.f32 %v100, 1.0
    %v103 = vmax.f32 %v101, 0.0
    %v104 = vmax.f32 %v102, 0.0
    %v105 = vld [vmem:[#allocation2] sm:$0xff]
    %v106 = vld [vmem:[#allocation2 + $0x8] sm:$0xff]
    %v107 = vadd.f32 %v105, %v103
    %v108 = vadd.f32 %v106, %v104
    %vm109 = vcmask 7168
    %110 = vst.msk [vmem:[#allocation2] sm:$0xff] %vm109, %v107
    %111 = vst.msk [vmem:[#allocation2 + $0x8] sm:$0xff] %vm109, %v108
    // Predicated region
    $region30: #{tpu_custom_call.1} parent=1 // pred_check
      %p112 = pneg %p74
    $region31: #{tpu_custom_call.1} parent=1 // pred_check_branch
      %114 = sbr.rel (%p112) target = $region33
    $region32: #{tpu_custom_call.1} parent=1 // pred_region
      %v115 = vld [vmem:[#allocation2] sm:$0xff]
      %v116 = vld [vmem:[#allocation2 + $0x8] sm:$0xff]
      %v117 = vsel %vm109, %v115, 0.0
      %v118 = vsel %vm109, %v116, 0.0
      %v119 = vadd.f32 %v117, %v118
      %120 = vadd.xlane.f32.xlu0 %v119
      %v121 = vpop.xlane.xlu0 %120
      %v122 = vrot.slane %v121, 4
      %v123 = vadd.f32 %v121, %v122
      %v124 = vrot.slane %v123, 2
      %v125 = vadd.f32 %v123, %v124
      %v126 = vrot.slane %v125, 1
      %v127 = vadd.f32 %v125, %v126
      %s128 = vtos %v127
      %v129 = vstv %s128
      %v130 = vadd.f32 %v129, 0.0
      %131 = vst [vmem:[#allocation9] sm:$0xff] %v130
    $region33: #{tpu_custom_call.1} parent=1 // pred_fallthru
      _
    // Predicated region
    $region34: #{tpu_custom_call.1} parent=1 // pred_check
      _
    $region35: #{tpu_custom_call.1} parent=1 // pred_check_branch
      %133 = sbr.rel (0) target = $region37
    $region36: #{tpu_custom_call.1} parent=1 // pred_region
      %s135 = ssub.s32 128, 128
      %136 = vsyncadd [#allocation5], %s135
      %s138 = sshll.u32 [#allocation9], 4
      %s139 = int_to_ptr.vmem [resolvable:$true] %s138
      %141 = dma.vmem_to_hbm [thread:$0]  %s139, 128, %s3, [#allocation5]
    $region37: #{tpu_custom_call.1} parent=1 // pred_fallthru
      _
    // Predicated region
    $region38: #{tpu_custom_call.1} parent=1 // pred_check
      _
    $region39: #{tpu_custom_call.1} parent=1 // pred_check_branch
      %143 = sbr.rel (0) target = $region41
    $region40: #{tpu_custom_call.1} parent=1 // pred_region
      %144 = dma.done [#allocation5], 128
    $region41: #{tpu_custom_call.1} parent=1 // pred_fallthru
      _
    %145 = vsyncpa [#allocation4], 1
    %146 = vsyncpa [#allocation7], 1
    %147 = vsyncpa [#allocation5], 1

</llo_original>
